<compile_context>
chip_gen: v7x
topology: tpu7x:2x2x1
jax: 0.10.0
libtpu: 0.0.40
codegen_flags: <defaults>
</compile_context>

<pallas_src>
import math
import numpy as np
import jax
import jax.numpy as jnp
from jax.experimental import pallas as pl
from jax.experimental.pallas import tpu as pltpu


# ------------------------------- kernel ------------------------------------ #
def _wscale_kernel(s_ref, x_ref, b_ref, o_ref):
    # s_ref: (1,) f32 scalar in SMEM. x tile: (n_blk, c_blk, hw_blk) or
    # (r_blk, c_blk); bias tile ((c_blk, 1) / (1, c_blk)) broadcasts onto it.
    y = x_ref[...].astype(jnp.float32) * s_ref[0] + b_ref[...]
    o_ref[...] = y.astype(o_ref.dtype)


# --------------------------- tiling helpers --------------------------------- #
_LANE = 128
_LANE_CAP = 8 * 1024            # max lanes per block
_TARGET_ELEMS = 1 << 20         # ~1M elems per x / out block (~4 MiB at f32)
_VMEM_LIMIT = 32 << 20          # explicit scoped-VMEM budget (safe v5e/v6e/v7x)


def _sublane_align(dtype):
    """Min second-minor alignment: 8 for f32, 16 for bf16/f16, 32 for int8/fp8."""
    bits = jnp.dtype(dtype).itemsize * 8
    return max(8, 256 // bits)


def _pick_block(dim, align, cap):
    """Largest legal block size <= cap along one axis.

    Legal = equals the full array dim, or a multiple of `align`; ragged
    trailing blocks are padded/masked by Pallas.
    """
    if dim <= cap:
        return dim
    return max(align, (cap // align) * align)


def _half_aligned(dim, align):
    """~dim/2 rounded up to `align` (used to force >= 2 grid steps)."""
    return max(align, (((dim + 1) // 2 + align - 1) // align) * align)


def _compiler_params(n_axes):
    return pltpu.CompilerParams(
        dimension_semantics=("parallel",) * n_axes,
        vmem_limit_bytes=_VMEM_LIMIT)


# ---------------------------- pallas_call paths ----------------------------- #
def _run_3d(x3, bias_col, scale_arr, inplace):
    """y = x * scale + bias over an (N, C, HW) stream (HW % 128 == 0)."""
    n, c, hw = x3.shape
    sub = _sublane_align(x3.dtype)
    hw_blk = _pick_block(hw, _LANE, _LANE_CAP)
    c_cap = max(sub, (_TARGET_ELEMS // hw_blk) // sub * sub)
    c_blk = _pick_block(c, sub, c_cap)
    n_blk = min(n, max(1, _TARGET_ELEMS // (c_blk * hw_blk)))
    # Megacore (v7x): keep at least 2 grid steps when the tensor allows it.
    if pl.cdiv(n, n_blk) * pl.cdiv(c, c_blk) * pl.cdiv(hw, hw_blk) < 2:
        if n >= 2:
            n_blk = (n + 1) // 2
        elif c >= 2 * sub:
            c_blk = _half_aligned(c, sub)
    grid = (pl.cdiv(n, n_blk), pl.cdiv(c, c_blk), pl.cdiv(hw, hw_blk))

    return pl.pallas_call(
        _wscale_kernel,
        out_shape=jax.ShapeDtypeStruct((n, c, hw), x3.dtype),
        grid=grid,
        in_specs=[
            pl.BlockSpec(memory_space=pltpu.MemorySpace.SMEM),        # scale
            pl.BlockSpec((n_blk, c_blk, hw_blk), lambda i, j, k: (i, j, k)),
            pl.BlockSpec((c_blk, 1), lambda i, j, k: (j, 0)),         # bias (C,1)
        ],
        out_specs=pl.BlockSpec((n_blk, c_blk, hw_blk), lambda i, j, k: (i, j, k)),
        compiler_params=_compiler_params(3),
        input_output_aliases=({1: 0} if inplace else {}),
    )(scale_arr, x3, bias_col)


def _run_2d(x2, bias_row, scale_arr, inplace):
    """y = x * scale + bias over an (R, C) stream."""
    n, c = x2.shape
    sub = _sublane_align(x2.dtype)
    c_blk = _pick_block(c, _LANE, _LANE_CAP)
    r_cap = max(sub, (_TARGET_ELEMS // c_blk) // sub * sub)
    r_blk = _pick_block(n, sub, r_cap)
    # Megacore (v7x): keep at least 2 grid steps when the tensor allows it.
    if pl.cdiv(n, r_blk) * pl.cdiv(c, c_blk) < 2:
        if n >= 2 * sub:
            r_blk = _half_aligned(n, sub)
        elif c >= 2 * _LANE:
            c_blk = _half_aligned(c, _LANE)
    grid = (pl.cdiv(n, r_blk), pl.cdiv(c, c_blk))

    return pl.pallas_call(
        _wscale_kernel,
        out_shape=jax.ShapeDtypeStruct((n, c), x2.dtype),
        grid=grid,
        in_specs=[
            pl.BlockSpec(memory_space=pltpu.MemorySpace.SMEM),        # scale
            pl.BlockSpec((r_blk, c_blk), lambda i, j: (i, j)),
            pl.BlockSpec((1, c_blk), lambda i, j: (0, j)),            # bias (1,C)
        ],
        out_specs=pl.BlockSpec((r_blk, c_blk), lambda i, j: (i, j)),
        compiler_params=_compiler_params(2),
        input_output_aliases=({1: 0} if inplace else {}),
    )(scale_arr, x2, bias_row)


def _run_2d_lane_packed(x2, bias_row, scale_arr, inplace):
    """2-D path that repacks rows into the lane axis when C < 128, so stores
    stay unmasked full-lane vst instead of masked partial stores."""
    n, c = x2.shape
    if c >= _LANE:
        return _run_2d(x2, bias_row, scale_arr, inplace)
    k = _LANE // math.gcd(c, _LANE)          # smallest k with (k*c) % 128 == 0
    n_pad = ((n + k - 1) // k) * k
    xp = x2 if n_pad == n else jnp.pad(x2, ((0, n_pad - n), (0, 0)))
    xp = xp.reshape(n_pad // k, k * c)
    bp = jnp.tile(bias_row, (1, k))          # (1, k*C) matches the row packing
    yp = _run_2d(xp, bp, scale_arr, inplace)
    return yp.reshape(n_pad, c)[:n]


# ------------------------------- wrapper ------------------------------------ #
class WScaleLayer:
    """Pallas port of the PyTorch WScaleLayer (scale by constant + add bias)."""

    def __init__(self, in_channels, out_channels, kernel_size, gain=np.sqrt(2.0)):
        fan_in = in_channels * kernel_size * kernel_size
        self.scale = float(gain / np.sqrt(fan_in))
        # nn.Parameter(torch.zeros(out_channels)) -> deterministic zeros init.
        self.bias = jnp.zeros((out_channels,), dtype=jnp.float32)
        self.out_channels = out_channels

    def __call__(self, x, *, inplace=False):
        # inplace=True aliases the output onto x's HBM buffer
        # (input_output_aliases); only use when x is dead after this layer.
        scale_arr = jnp.full((1,), self.scale, dtype=jnp.float32)
        bias = self.bias.astype(jnp.float32)

        if x.ndim == 4:
            n, c, h, w = x.shape
            assert c == self.out_channels
            hw = h * w
            if hw % _LANE == 0:
                # Lane-friendly spatial extent: stream as (N, C, HW).
                x3 = x.reshape(n, c, hw)                 # free row-major collapse
                y3 = _run_3d(x3, bias.reshape(c, 1), scale_arr, inplace)
                return y3.reshape(n, c, h, w)
            # Small / ragged spatial extent (e.g. 4x4, 8x8 maps): flatten to
            # (N, C*HW) with a lane-dense repeated bias -> unmasked stores.
            x2 = x.reshape(n, c * hw)
            bias2 = jnp.repeat(bias, hw).reshape(1, c * hw)
            y2 = _run_2d_lane_packed(x2, bias2, scale_arr, inplace)
            return y2.reshape(n, c, h, w)

        if x.ndim == 2:
            n, c = x.shape
            assert c == self.out_channels
            return _run_2d_lane_packed(x, bias.reshape(1, c), scale_arr, inplace)

        raise ValueError(
            'The input tensor should be with shape [batch_size, channel, '
            f'height, width], or [batch_size, channel]!\nBut {x.shape} is received!')


# --------------------------------- main ------------------------------------- #
if __name__ == "__main__":
    key = jax.random.PRNGKey(0)
    k4, k2, ks = jax.random.split(key, 3)

    # ---- 4-D, lane-friendly spatial (H*W = 256) ----
    in_channels, out_channels, kernel_size = 3, 4, 3
    layer = WScaleLayer(in_channels, out_channels, kernel_size)
    # deterministic non-trivial bias to exercise the broadcast paths
    layer.bias = jnp.arange(out_channels, dtype=jnp.float32) * 0.1

    x4 = jax.random.normal(k4, (2, 4, 16, 16), dtype=jnp.float32)
    y4 = jax.block_until_ready(layer(x4))
    ref4 = x4 * layer.scale + layer.bias.reshape(1, -1, 1, 1)
    assert y4.shape == ref4.shape
    assert jnp.allclose(y4, ref4, atol=1e-6), "4D mismatch"

    # ---- 2-D (narrow C -> row-packed lane-dense path) ----
    x2 = jax.random.normal(k2, (2, 4), dtype=jnp.float32)
    y2 = jax.block_until_ready(layer(x2))
    ref2 = x2 * layer.scale + layer.bias.reshape(1, -1)
    assert jnp.allclose(y2, ref2, atol=1e-6), "2D mismatch"

    # ---- 4-D, small spatial (4x4 -> flattened lane-dense path) ----
    layer_s = WScaleLayer(8, 8, 3)
    layer_s.bias = jnp.linspace(-0.5, 0.5, 8).astype(jnp.float32)
    x4s = jax.random.normal(ks, (2, 8, 4, 4), dtype=jnp.float32)
    y4s = jax.block_until_ready(layer_s(x4s))
    ref4s = x4s * layer_s.scale + layer_s.bias.reshape(1, -1, 1, 1)
    assert jnp.allclose(y4s, ref4s, atol=1e-6), "small-HW 4D mismatch"

    # ---- bf16 4-D smoke test (kernel computes in f32, casts to output dtype) ----
    x4b = x4.astype(jnp.bfloat16)
    y4b = jax.block_until_ready(layer(x4b))
    ref4b = (x4b.astype(jnp.float32) * layer.scale
             + layer.bias.reshape(1, -1, 1, 1)).astype(jnp.bfloat16)
    assert y4b.dtype == jnp.bfloat16
    assert jnp.allclose(y4b.astype(jnp.float32), ref4b.astype(jnp.float32),
                        atol=2e-2), "bf16 4D mismatch"

    print("KERNEL_OK")
</pallas_src>

<mosaic_0001>
module attributes {stable_mosaic.version = 11 : i64} {
  func.func @_wscale_kernel(%arg0: i32, %arg1: i32, %arg2: i32, %arg3: memref<1xf32, #tpu.memory_space<smem>>, %arg4: memref<1x4x256xf32, #tpu.memory_space<vmem>>, %arg5: memref<4x1xf32, #tpu.memory_space<vmem>>, %arg6: memref<1x4x256xf32, #tpu.memory_space<vmem>>) attributes {dimension_semantics = [#tpu.dimension_semantics<parallel>, #tpu.dimension_semantics<parallel>, #tpu.dimension_semantics<parallel>], iteration_bounds = array<i64: 2, 1, 1>, scalar_prefetch = 0 : i64, scratch_operands = 0 : i64, tpu.core_type = #tpu.core_type<tc>, window_params = [{transform_indices = @transform_0, window_bounds = array<i64: 1>}, {transform_indices = @transform_1, window_bounds = array<i64: 1, 4, 256>}, {transform_indices = @transform_2, window_bounds = array<i64: 4, 1>}, {transform_indices = @transform_3, window_bounds = array<i64: 1, 4, 256>}]} {
    %c0 = arith.constant 0 : index
    %c0_0 = arith.constant 0 : index
    %c0_1 = arith.constant 0 : index
    %0 = vector.load %arg4[%c0, %c0_0, %c0_1] : memref<1x4x256xf32, #tpu.memory_space<vmem>>, vector<1x4x256xf32>
    %c0_2 = arith.constant 0 : index
    %1 = memref.load %arg3[%c0_2] : memref<1xf32, #tpu.memory_space<smem>>
    %2 = vector.broadcast %1 : f32 to vector<1x4x256xf32>
    %3 = arith.mulf %0, %2 : vector<1x4x256xf32>
    %c0_3 = arith.constant 0 : index
    %c0_4 = arith.constant 0 : index
    %4 = vector.load %arg5[%c0_3, %c0_4] : memref<4x1xf32, #tpu.memory_space<vmem>>, vector<4x1xf32>
    %5 = vector.shape_cast %4 : vector<4x1xf32> to vector<1x4x1xf32>
    %6 = vector.broadcast %5 : vector<1x4x1xf32> to vector<1x4x256xf32>
    %7 = arith.addf %3, %6 : vector<1x4x256xf32>
    %c0_5 = arith.constant 0 : index
    %c0_6 = arith.constant 0 : index
    %c0_7 = arith.constant 0 : index
    %8 = vector.load %arg6[%c0_5, %c0_6, %c0_7] : memref<1x4x256xf32, #tpu.memory_space<vmem>>, vector<1x4x256xf32>
    tpu.vector_store %arg6[%c0_5, %c0_6, %c0_7], %7 {strides = array<i32>} : memref<1x4x256xf32, #tpu.memory_space<vmem>>, vector<1x4x256xf32>,
    return
  }
  func.func @transform_0(%arg0: i32, %arg1: i32, %arg2: i32) -> i32 {
    %c0_i32 = arith.constant 0 : i32
    %c0_i32_0 = arith.constant 0 : i32
    return %c0_i32 : i32
  }
  func.func @transform_1(%arg0: i32, %arg1: i32, %arg2: i32) -> (i32, i32, i32) {
    %c0_i32 = arith.constant 0 : i32
    return %arg0, %arg1, %arg2 : i32, i32, i32
  }
  func.func @transform_2(%arg0: i32, %arg1: i32, %arg2: i32) -> (i32, i32) {
    %c0_i32 = arith.constant 0 : i32
    %c0_i32_0 = arith.constant 0 : i32
    return %arg1, %c0_i32 : i32, i32
  }
  func.func @transform_3(%arg0: i32, %arg1: i32, %arg2: i32) -> (i32, i32, i32) {
    %c0_i32 = arith.constant 0 : i32
    return %arg0, %arg1, %arg2 : i32, i32, i32
  }
}

</mosaic_0001>

<llo_original>
// kernel: tpu_custom_call.1
$region0: #{tpu_custom_call.1}
  #allocation0 [shape = 'u32[]', space=smem, size = 0x4, offset = 0x4, fixed_abs, tag = 'smem constant byte address 0x4 - core index']
  #allocation1 [shape = 'u32[144,128]{1,0:T(1,128)}', space=vmem, size = 0x12000, scoped, tag = 'internal scratch']
  #allocation2 [shape = 'f32[1]{0:T(128)S(6)}', space=smem, size = 0x200, scoped, tag = 'scoped memory for tpu_custom_call.1']
  %s0 = inlined_call_operand.<no memory space> [shape: f32[1], index: 0, kind: input, shape index: {}]
  %s1 = inlined_call_operand.hbm [shape: f32[2,4,256], index: 1, kind: input, shape index: {}]
  %s2 = inlined_call_operand.vmem [shape: f32[4,1], index: 2, kind: input, shape index: {}]
  %s3 = inlined_call_operand.hbm [shape: f32[2,4,256], index: 3, kind: output, shape index: {}]
  %s4 = sld [smem:[#allocation0]]
  $region49: #{tpu_custom_call.1} parent=0
    _
  %s6 = ssub.s32 1, %s4
  %s7 = scalar_select 0, %s6, %s4
  %8 = sst [smem:[#allocation2]] %s0
  $region1: #{tpu_custom_call.1} parent=0
    #allocation3 [shape = 'u8[8192]{0}', space=vmem, size = 0x2000, scoped, tag = 'input window, operand 1']
    #allocation4 [shape = 's32[2]{0}', space=sflag, size = 0x8, scoped, tag = 'scoped memory for tpu_custom_call.1']
    #allocation5 [shape = 's32[2]{0}', space=sflag, size = 0x8, scoped, tag = 'scoped memory for tpu_custom_call.1']
    #allocation6 [shape = 'u8[8192]{0}', space=vmem, size = 0x2000, scoped, tag = 'output window, operand 0']
    %9 = vsyncpa [#allocation4], 0
    %s10 = scalar_lea.sflag [#allocation4], 1
    %11 = vsyncpa %s10, 0
    %12 = vsyncpa [#allocation5], 0
    %s13 = scalar_lea.sflag [#allocation5], 1
    %14 = vsyncpa %s13, 0
    loop: start=0, step=1, limit=4
    $region2: #{tpu_custom_call.1} parent=1 // loop_pre_header
      _
    $region3: #{tpu_custom_call.1} parent=1 // loop_header
      %s16 = sphi 0, %s20
      %p17 = scmp.ge.s32.totalorder %s16, 4
      %s23 = sphi 0, %s42
      %s24 = sphi 0, %s38
      %s25 = sphi 0, %s34
      %s26 = sphi 0, %s23
      %s27 = sphi 0, %s24
      %s28 = sphi 0, %s25
      %s29 = sphi 0, %s26
      %s30 = sphi 0, %s27
      %s31 = sphi 0, %s28
      %s43 = sphi 0, %s43
      %s45 = sphi 0, %s43
      %s46 = sphi 0, %s45
      %s60 = sphi 0, %s46
      %s70 = sphi 0, %s72
      %s73 = sphi 0, %s70
      %s74 = sphi 0, %s73
      %s90 = sphi 0, %s74
      %s96 = sphi 0, %s98
      %s99 = sphi 0, %s96
      %s100 = sphi 0, %s99
      %s116 = sphi 0, %s100
      %s126 = sphi 0, %s128
      %s129 = sphi 0, %s126
      %s130 = sphi 0, %s129
      %s146 = sphi 0, %s130
    $region4: #{tpu_custom_call.1} parent=1 // loop_header_branch
      %19 = sbr.rel (%p17) target = $region8
    $region5: #{tpu_custom_call.1} parent=1 // loop_body
      %s21 = ssub.s32 %s16, 1
      %s22 = ssub.s32 %s16, 2
      %s32 = sadd.s32 1, %s25
      %p33 = scmp.ge.s32.totalorder %s32, 1
      %s34 = scalar_select %p33, 0, %s32
      %s35 = sadd.s32 1, %s24
      %s36 = scalar_select %p33, %s35, %s24
      %p37 = scmp.ge.s32.totalorder %s36, 1
      %s38 = scalar_select %p37, 0, %s36
      %s39 = sadd.s32 1, %s23
      %s40 = scalar_select %p37, %s39, %s23
      %p41 = scmp.ge.s32.totalorder %s40, 2
      %s42 = scalar_select %p41, 0, %s40
      %s44 = sadd.s32 %s43, 1
      %p47 = scmp.eq.s32.totalorder %s16, 1
      %p48 = scmp.ne.s32.totalorder %s43, %s45
      %p49 = scmp.eq.s32.totalorder %s16, 0
      %p50 = por %p48, %p49
      %p51 = scmp.ne.s32.totalorder %s43, %s45
      %p52 = scmp.eq.s32.totalorder %s21, 1
      %p53 = por %p51, %p52
      %p54 = scmp.ne.s32.totalorder %s45, %s46
      %p55 = scmp.eq.s32.totalorder %s21, 0
      %p56 = por %p54, %p55
      %p57 = scmp.ne.s32.totalorder %s45, %s46
      %p58 = scmp.eq.s32.totalorder %s22, 1
      %p59 = por %p57, %p58
      %p61 = scmp.ne.s32.totalorder %s46, %s60
      %p62 = scmp.eq.s32.totalorder %s22, 0
      %p63 = por %p61, %p62
      %s64 = ssub.s32 %s23, %s42
      %s65 = ssub.s32 %s24, %s38
      %s66 = sor.u32 %s64, %s65
      %s67 = ssub.s32 %s25, %s34
      %s68 = sor.u32 %s66, %s67
      %p69 = scmp.eq.s32.totalorder %s68, 0
      %s71 = sadd.s32 %s70, 1
      %s72 = scalar_select %p69, %s70, %s71
      %p75 = pneg %p69
      %p76 = scmp.eq.s32.totalorder %s16, 1
      %p77 = por %p75, %p76
      %p78 = scmp.ne.s32.totalorder %s70, %s73
      %p79 = scmp.eq.s32.totalorder %s16, 0
      %p80 = por %p78, %p79
      %p81 = scmp.ne.s32.totalorder %s70, %s73
      %p82 = scmp.eq.s32.totalorder %s21, 1
      %p83 = por %p81, %p82
      %p84 = scmp.ne.s32.totalorder %s73, %s74
      %p85 = scmp.eq.s32.totalorder %s21, 0
      %p86 = por %p84, %p85
      %p87 = scmp.ne.s32.totalorder %s73, %s74
      %p88 = scmp.eq.s32.totalorder %s22, 1
      %p89 = por %p87, %p88
      %p91 = scmp.ne.s32.totalorder %s74, %s90
      %p92 = scmp.eq.s32.totalorder %s22, 0
      %p93 = por %p91, %p92
      %s94 = ssub.s32 %s24, %s38
      %p95 = scmp.eq.s32.totalorder %s94, 0
      %s97 = sadd.s32 %s96, 1
      %s98 = scalar_select %p95, %s96, %s97
      %p101 = pneg %p95
      %p102 = scmp.eq.s32.totalorder %s16, 1
      %p103 = por %p101, %p102
      %p104 = scmp.ne.s32.totalorder %s96, %s99
      %p105 = scmp.eq.s32.totalorder %s16, 0
      %p106 = por %p104, %p105
      %p107 = scmp.ne.s32.totalorder %s96, %s99
      %p108 = scmp.eq.s32.totalorder %s21, 1
      %p109 = por %p107, %p108
      %p110 = scmp.ne.s32.totalorder %s99, %s100
      %p111 = scmp.eq.s32.totalorder %s21, 0
      %p112 = por %p110, %p111
      %p113 = scmp.ne.s32.totalorder %s99, %s100
      %p114 = scmp.eq.s32.totalorder %s22, 1
      %p115 = por %p113, %p114
      %p117 = scmp.ne.s32.totalorder %s100, %s116
      %p118 = scmp.eq.s32.totalorder %s22, 0
      %p119 = por %p117, %p118
      %s120 = ssub.s32 %s23, %s42
      %s121 = ssub.s32 %s24, %s38
      %s122 = sor.u32 %s120, %s121
      %s123 = ssub.s32 %s25, %s34
      %s124 = sor.u32 %s122, %s123
      %p125 = scmp.eq.s32.totalorder %s124, 0
      %s127 = sadd.s32 %s126, 1
      %s128 = scalar_select %p125, %s126, %s127
      %p131 = pneg %p125
      %p132 = scmp.eq.s32.totalorder %s16, 1
      %p133 = por %p131, %p132
      %p134 = scmp.ne.s32.totalorder %s126, %s129
      %p135 = scmp.eq.s32.totalorder %s16, 0
      %p136 = por %p134, %p135
      %p137 = scmp.ne.s32.totalorder %s126, %s129
      %p138 = scmp.eq.s32.totalorder %s21, 1
      %p139 = por %p137, %p138
      %p140 = scmp.ne.s32.totalorder %s129, %s130
      %p141 = scmp.eq.s32.totalorder %s21, 0
      %p142 = por %p140, %p141
      %p143 = scmp.ne.s32.totalorder %s129, %s130
      %p144 = scmp.eq.s32.totalorder %s22, 1
      %p145 = por %p143, %p144
      %p147 = scmp.ne.s32.totalorder %s130, %s146
      %p148 = scmp.eq.s32.totalorder %s22, 0
      %p149 = por %p147, %p148
      %p150 = scmp.le.s32.totalorder 1, %s16
      %p151 = scmp.lt.s32.totalorder %s16, 3
      %p152 = pnand %p150, %p151
      %p153 = pneg %p152
      // Predicated region
      $region9: #{tpu_custom_call.1} parent=5 // pred_check
        _
      $region10: #{tpu_custom_call.1} parent=5 // pred_check_branch
        %155 = sbr.rel (%p152) target = $region12
      $region11: #{tpu_custom_call.1} parent=5 // pred_region
        %s156 = ssub.s32 %s16, 1
        // Predicated region
        $region13: #{tpu_custom_call.1} parent=11 // pred_check
          %p157 = pneg %p56
        $region14: #{tpu_custom_call.1} parent=11 // pred_check_branch
          %159 = sbr.rel (%p157) target = $region16
        $region15: #{tpu_custom_call.1} parent=11 // pred_region
          _
        $region16: #{tpu_custom_call.1} parent=11 // pred_fallthru
          _
        // Predicated region
        $region17: #{tpu_custom_call.1} parent=11 // pred_check
          %p160 = pneg %p112
        $region18: #{tpu_custom_call.1} parent=11 // pred_check_branch
          %162 = sbr.rel (%p160) target = $region20
        $region19: #{tpu_custom_call.1} parent=11 // pred_region
          %p163 = scmp.lt.s32.totalorder %s27, 0
          %s164 = scalar_select %p163, %s27, 0
          %s165 = smul.addr %s164, 4
          %s166 = scalar_lea.vmem %s2, %s165
        $region20: #{tpu_custom_call.1} parent=11 // pred_fallthru
          _
      $region12: #{tpu_custom_call.1} parent=5 // pred_fallthru
        _
      %p167 = scmp.lt.s32.totalorder %s16, 2
      // Predicated region
      $region21: #{tpu_custom_call.1} parent=5 // pred_check
        %p168 = pneg %p167
      $region22: #{tpu_custom_call.1} parent=5 // pred_check_branch
        %170 = sbr.rel (%p168) target = $region24
      $region23: #{tpu_custom_call.1} parent=5 // pred_region
        // Predicated region
        $region25: #{tpu_custom_call.1} parent=23 // pred_check
          %p171 = pneg %p80
        $region26: #{tpu_custom_call.1} parent=23 // pred_check_branch
          %173 = sbr.rel (%p171) target = $region28
        $region27: #{tpu_custom_call.1} parent=23 // pred_region
          %s174 = sand.u32 %s70, 1
          %s175 = scalar_lea.sflag [#allocation4], %s174
          %s176 = sand.u32 %s70, 1
          %s177 = smul.addr %s176, 8
          %s178 = scalar_lea.vmem [#allocation3], %s177
          %s179 = smul.u32 2, %s25
          %s181 = ssub.s32 128, 128
          %182 = vsyncadd %s175, %s181
          %s183 = smul.addr %s24, 2
          %s184 = sadd.s32 %s179, %s183
          %s185 = smul.addr %s23, 2
          %s186 = sadd.s32 %s184, %s185
          %s187 = smul.addr %s186, 64
          %s188 = scalar_lea.hbm %s1, %s187
          %s190 = sshll.u32 %s178, 4
          %s191 = int_to_ptr.vmem [resolvable:$true] %s190
          %193 = dma.hbm_to_vmem [thread:$0]  %s188, 128, %s191, %s175
        $region28: #{tpu_custom_call.1} parent=23 // pred_fallthru
          _
      $region24: #{tpu_custom_call.1} parent=5 // pred_fallthru
        _
      %p194 = scmp.le.s32.totalorder 1, %s16
      %p195 = scmp.lt.s32.totalorder %s16, 3
      %p196 = pnand %p194, %p195
      %p197 = pneg %p196
      // Predicated region
      $region29: #{tpu_custom_call.1} parent=5 // pred_check
        _
      $region30: #{tpu_custom_call.1} parent=5 // pred_check_branch
        %199 = sbr.rel (%p196) target = $region32
      $region31: #{tpu_custom_call.1} parent=5 // pred_region
        %s200 = ssub.s32 %s16, 1
        %s201 = sand.u32 %s73, 1
        %s202 = scalar_lea.sflag [#allocation4], %s201
        %s203 = sand.u32 %s73, 1
        %s204 = smul.addr %s203, 8
        %s205 = scalar_lea.vmem [#allocation3], %s204
        // Predicated region
        $region33: #{tpu_custom_call.1} parent=31 // pred_check
          %p206 = pneg %p86
        $region34: #{tpu_custom_call.1} parent=31 // pred_check_branch
          %208 = sbr.rel (%p206) target = $region36
        $region35: #{tpu_custom_call.1} parent=31 // pred_region
          %209 = dma.done %s202, 128
        $region36: #{tpu_custom_call.1} parent=31 // pred_fallthru
          _
        %p210 = pneg %p56
        %p211 = pneg %p53
        %s212 = sand.u32 %s73, 1
        %s213 = scalar_lea.sflag [#allocation4], %s212
        %s214 = sand.u32 %s73, 1
        %s215 = smul.addr %s214, 8
        %s216 = scalar_lea.vmem [#allocation3], %s215
        %p217 = pneg %p86
        %p218 = pneg %p83
        %p219 = scmp.lt.s32.totalorder %s27, 0
        %s220 = scalar_select %p219, %s27, 0
        %s221 = smul.addr %s220, 4
        %s222 = scalar_lea.vmem %s2, %s221
        %p223 = pneg %p112
        %p224 = pneg %p109
        %p225 = pneg %p142
        %p226 = pneg %p139
        %s227 = sand.u32 %s129, 1
        %s228 = scalar_lea.sflag [#allocation5], %s227
        %s229 = sand.u32 %s129, 1
        %s230 = smul.addr %s229, 8
        %s231 = scalar_lea.vmem [#allocation6], %s230
        %s232 = smul.u32 2, %s28
        %p233 = scmp.lt.s32.totalorder %s27, 0
        %s234 = scalar_select %p233, %s27, 0
        %s235 = smul.addr %s234, 4
        %s236 = scalar_lea.vmem %s2, %s235
        %s237 = smul.u32 2, %s28
        %v238 = vld [vmem:[%s205] sm:$0xff]
        %s239 = sld [smem:[#allocation2]]
        %v240 = vstv %s239
        %v241 = vmul.f32 %v238, %v240
        %v242 = vld [vmem:[%s236] sm:$0xf]
        %244 = vset.pattern.permute.xlu0 0
        %245 = vperm.xlu0 %244, %v242
        %v246 = vpop.permute.xlu0 %245
        %v248 = vunpack.c.l.s4 839922192
        %v249 = vunpack.c.0.s8 %v248
        %v250 = vlaneseq
        %v251 = vshrl.u32 %v250, 7
        %v252 = vsub.s32 %v249, %v251
        %v253 = vrot.slane %v246, %v252
        %v255 = vadd.f32 %v241, %v253
        %256 = vst [vmem:[%s231] sm:$0xff] %v255
        %s257 = sand.u32 %s129, 1
        %s258 = scalar_lea.sflag [#allocation5], %s257
        %s259 = sand.u32 %s129, 1
        %s260 = smul.addr %s259, 8
        %s261 = scalar_lea.vmem [#allocation6], %s260
        // Predicated region
        $region37: #{tpu_custom_call.1} parent=31 // pred_check
          %p262 = pneg %p139
        $region38: #{tpu_custom_call.1} parent=31 // pred_check_branch
          %264 = sbr.rel (%p262) target = $region40
        $region39: #{tpu_custom_call.1} parent=31 // pred_region
          %s265 = smul.u32 2, %s28
          %s267 = ssub.s32 128, 128
          %268 = vsyncadd %s258, %s267
          %s269 = smul.addr %s27, 2
          %s270 = sadd.s32 %s265, %s269
          %s271 = smul.addr %s26, 2
          %s272 = sadd.s32 %s270, %s271
          %s273 = smul.addr %s272, 64
          %s274 = scalar_lea.hbm %s3, %s273
          %s276 = sshll.u32 %s261, 4
          %s277 = int_to_ptr.vmem [resolvable:$true] %s276
          %279 = dma.vmem_to_hbm [thread:$0]  %s277, 128, %s274, %s258
        $region40: #{tpu_custom_call.1} parent=31 // pred_fallthru
          _
      $region32: #{tpu_custom_call.1} parent=5 // pred_fallthru
        _
      %p280 = scmp.le.s32.totalorder 2, %s16
      // Predicated region
      $region41: #{tpu_custom_call.1} parent=5 // pred_check
        %p281 = pneg %p280
      $region42: #{tpu_custom_call.1} parent=5 // pred_check_branch
        %283 = sbr.rel (%p281) target = $region44
      $region43: #{tpu_custom_call.1} parent=5 // pred_region
        %s284 = ssub.s32 %s16, 2
        // Predicated region
        $region45: #{tpu_custom_call.1} parent=43 // pred_check
          %p285 = pneg %p145
        $region46: #{tpu_custom_call.1} parent=43 // pred_check_branch
          %287 = sbr.rel (%p285) target = $region48
        $region47: #{tpu_custom_call.1} parent=43 // pred_region
          %s288 = sand.u32 %s130, 1
          %s289 = scalar_lea.sflag [#allocation5], %s288
          %s290 = sand.u32 %s130, 1
          %s291 = smul.addr %s290, 8
          %s292 = scalar_lea.vmem [#allocation6], %s291
          %293 = dma.done %s289, 128
        $region48: #{tpu_custom_call.1} parent=43 // pred_fallthru
          _
      $region44: #{tpu_custom_call.1} parent=5 // pred_fallthru
        _
    $region6: #{tpu_custom_call.1} parent=1 // loop_footer
      %s20 = sadd.s32 1, %s16
    $region7: #{tpu_custom_call.1} parent=1 // loop_footer_branch
      %15 = sbr.rel target = $region3
    $region8: #{tpu_custom_call.1} parent=1 // loop_exit
      _
    %294 = vsyncpa [#allocation4], 1
    %s295 = scalar_lea.sflag [#allocation4], 1
    %296 = vsyncpa %s295, 1
    %297 = vsyncpa [#allocation5], 1
    %s298 = scalar_lea.sflag [#allocation5], 1
    %299 = vsyncpa %s298, 1

</llo_original>
